<compile_context>
chip_gen: v6e
topology: v6e:2x2x1
jax: 0.10.0
libtpu: 0.0.40
codegen_flags: <defaults>
</compile_context>

<pallas_src>
import math
import functools

import jax
import jax.numpy as jnp
from jax.experimental import pallas as pl
from jax.experimental.pallas import tpu as pltpu


_SQRT_2_OVER_PI = 0.7978845608028654
_INV_SQRT_2 = 1.0 / math.sqrt(2.0)


# ---------------------------------------------------------------------------
# Activation
# ---------------------------------------------------------------------------
def _erf_exact(x):
    """Abramowitz & Stegun 7.1.26 erf (~1.5e-7 abs err), divide on the EUP."""
    a1, a2, a3, a4, a5 = (0.254829592, -0.284496736, 1.421413741,
                          -1.453152027, 1.061405429)
    p = 0.3275911
    ax = jnp.abs(x)
    # approx reciprocal -> single EUP op instead of multi-step VALU divide.
    t = pl.reciprocal(1.0 + p * ax, approx=True)
    poly = ((((a5 * t + a4) * t + a3) * t + a2) * t + a1) * t
    e = 1.0 - poly * jnp.exp(-ax * ax)
    return jnp.where(x >= 0.0, e, -e)


def _apply_act(h, act, exact_gelu):
    if act == "gelu":
        if exact_gelu:
            # exact (erf) gelu, as in the PyTorch module.
            return h * 0.5 * (1.0 + _erf_exact(h * _INV_SQRT_2))
        # tanh-approx gelu: tanh runs on the EUP (separate bundle slot), cutting
        # VALU ops on the largest tensor in the kernel roughly in half.
        return 0.5 * h * (1.0 + jnp.tanh(_SQRT_2_OVER_PI * (h + 0.044715 * h * h * h)))
    if act == "relu":
        return jnp.maximum(h, 0.0)
    if act == "swish":
        return h * jax.nn.sigmoid(h)
    if act == "tanh":
        return jnp.tanh(h)
    if act == "sigmoid":
        return jax.nn.sigmoid(h)
    raise ValueError(f"unknown hidden_act: {act}")


def _layer_norm_store(hidden, gamma, beta, eps, o_ref):
    mu = jnp.mean(hidden, axis=-1, keepdims=True)
    var = jnp.mean(jnp.square(hidden - mu), axis=-1, keepdims=True)
    normed = (hidden - mu) * jax.lax.rsqrt(var + eps)
    # Single lane-dense store of the whole (TM, H) output tile.
    # TODO(synk): if H is not a multiple of 128, pad H with masked LN stats to
    # make stores fully lane-dense (not needed for correctness).
    o_ref[...] = (normed * gamma + beta).astype(o_ref.dtype)


# ---------------------------------------------------------------------------
# Kernels
# ---------------------------------------------------------------------------
def _ffn_resident_kernel(x_ref, w1_ref, b1_ref, w2_ref, b2_ref,
                         gamma_ref, beta_ref, o_ref, *, act, eps, exact_gelu):
    """Whole-resident weights (fit in VMEM); grid over row tiles only."""
    x_f32 = x_ref[...].astype(jnp.float32)                 # (TM, H)
    # dense_1: (TM, H) @ (H, I); bf16 operands, fp32 accumulation.
    h = jnp.dot(x_f32.astype(jnp.bfloat16), w1_ref[...],
                preferred_element_type=jnp.float32)
    h = _apply_act(h + b1_ref[...], act, exact_gelu)
    # dense_2: (TM, I) @ (I, H).
    y = jnp.dot(h.astype(jnp.bfloat16), w2_ref[...],
                preferred_element_type=jnp.float32)
    # dropout: identity (eval mode). TODO(synk): training-mode stochastic dropout.
    hidden = y + b2_ref[...] + x_f32
    _layer_norm_store(hidden, gamma_ref[...], beta_ref[...], eps, o_ref)


def _ffn_ktiled_kernel(x_ref, w1_ref, b1_ref, w2_ref, b2_ref,
                       gamma_ref, beta_ref, o_ref, acc_ref,
                       *, act, eps, exact_gelu):
    """Weight-tiled fallback: grid=(rows, inner) with fp32 accumulator.

    Per step: act(x @ W1[:, k]) @ W2[k, :] accumulated into acc; residual +
    LayerNorm + store at the last k step.
    """
    k = pl.program_id(1)

    @pl.when(k == 0)
    def _():
        acc_ref[...] = jnp.zeros_like(acc_ref)

    x_bf = x_ref[...].astype(jnp.bfloat16)
    h = jnp.dot(x_bf, w1_ref[...], preferred_element_type=jnp.float32)   # (TM, TK)
    h = _apply_act(h + b1_ref[...], act, exact_gelu)
    acc_ref[...] += jnp.dot(h.astype(jnp.bfloat16), w2_ref[...],
                            preferred_element_type=jnp.float32)          # (TM, H)

    @pl.when(k == pl.num_programs(1) - 1)
    def _():
        hidden = acc_ref[...] + b2_ref[...] + x_ref[...].astype(jnp.float32)
        _layer_norm_store(hidden, gamma_ref[...], beta_ref[...], eps, o_ref)


# ---------------------------------------------------------------------------
# Tiling / resource helpers
# ---------------------------------------------------------------------------
def _round_up(x, m):
    return ((x + m - 1) // m) * m


def _pick_row_tile(rows, target):
    """Row tile (multiple of 8) + padded row count.

    Never collapses to tiny or full-extent tiles: rows are padded up to the
    tile instead.  The tile is capped at ~rows/2 so the 'parallel' grid axis
    has >= 2 steps (keeps both v7x TensorCores busy) whenever rows allow.
    """
    if rows < 16:
        tm = _round_up(max(rows, 1), 8)
    else:
        half = _round_up((rows + 1) // 2, 8)
        tm = max(8, min(_round_up(target, 8), half))
    padded = _round_up(rows, tm)
    return tm, padded


def _pick_k_tile(inner):
    for cand in (512, 256, 128):
        if inner % cand == 0:
            return cand
    return inner   # small inner: full extent (legal block shape)


def _vmem_limit_bytes(estimate):
    limit = int(estimate * 1.25) + (4 << 20)          # headroom + compiler scratch
    try:
        cap = int(pltpu.get_tpu_info().vmem_capacity_bytes)
    except Exception:
        cap = 64 << 20                                # v7x per-TC VMEM (safe floor)
    return max(8 << 20, min(limit, int(cap * 0.9)))


# ---------------------------------------------------------------------------
# Wrapper
# ---------------------------------------------------------------------------
def prepare_params(params):
    """One-time weight prep (keep OUT of the per-call hot path).

    nn.Linear stores W as (out, in); pre-transpose so the kernel does x @ W,
    and pre-cast MXU operands to bf16 once.
    """
    inner, H = params["w1"].shape
    return dict(
        w1=jnp.asarray(params["w1"]).T.astype(jnp.bfloat16),      # (H, inner)
        w2=jnp.asarray(params["w2"]).T.astype(jnp.bfloat16),      # (inner, H)
        b1=jnp.asarray(params["b1"]).reshape(1, inner).astype(jnp.float32),
        b2=jnp.asarray(params["b2"]).reshape(1, H).astype(jnp.float32),
        gamma=jnp.asarray(params["gamma"]).reshape(1, H).astype(jnp.float32),
        beta=jnp.asarray(params["beta"]).reshape(1, H).astype(jnp.float32),
    )


def feed_forward(input_tensor, prepared, *, hidden_act="gelu",
                 layer_norm_eps=1e-12, block_rows=256, exact_gelu=False,
                 weight_resident_limit_bytes=24 << 20, force_ktiled=False):
    """input_tensor: (B, S, H).  `prepared` = prepare_params(raw nn params)."""
    B, S, H = input_tensor.shape
    inner = prepared["w1"].shape[1]
    rows = B * S

    tm, padded = _pick_row_tile(rows, block_rows)
    grid_rows = padded // tm

    x2 = input_tensor.reshape(rows, H)
    if padded != rows:
        x2 = jnp.pad(x2, ((0, padded - rows), (0, 0)))

    in_bytes = x2.dtype.itemsize
    out_bytes = input_tensor.dtype.itemsize
    weights_bytes = 2 * H * inner + 2 * inner * H                     # bf16 W1 + W2
    small_bytes = 4 * (inner + 3 * H)                                 # b1,b2,gamma,beta

    cost = pl.CostEstimate(
        flops=4 * rows * H * inner,                                   # two matmuls
        transcendentals=rows * inner,                                 # one exp/tanh per elem
        bytes_accessed=rows * H * (in_bytes + out_bytes) + weights_bytes + small_bytes,
    )

    vmem_full = pl.BlockSpec(memory_space=pltpu.MemorySpace.VMEM)
    kernel_args = functools.partial
    use_ktiled = force_ktiled or (weights_bytes > weight_resident_limit_bytes)

    if not use_ktiled:
        kernel = kernel_args(_ffn_resident_kernel, act=hidden_act,
                             eps=layer_norm_eps, exact_gelu=exact_gelu)
        est = (weights_bytes + small_bytes
               + 2 * tm * H * in_bytes + 2 * tm * H * out_bytes       # 2x-buffered tiles
               + tm * inner * (4 + 2)                                 # f32 + bf16 intermediates
               + 4 * tm * H * 4)                                      # LN / residual temps
        grid_spec = pltpu.PrefetchScalarGridSpec(
            num_scalar_prefetch=0,
            grid=(grid_rows,),
            in_specs=[
                pl.BlockSpec((tm, H), lambda i: (i, 0)),              # x row tile
                vmem_full, vmem_full,                                 # W1, b1 (resident)
                vmem_full, vmem_full,                                 # W2, b2
                vmem_full, vmem_full,                                 # gamma, beta
            ],
            out_specs=pl.BlockSpec((tm, H), lambda i: (i, 0)),
        )
        dim_sem = ("parallel",)
    else:
        tk = _pick_k_tile(inner)
        kernel = kernel_args(_ffn_ktiled_kernel, act=hidden_act,
                             eps=layer_norm_eps, exact_gelu=exact_gelu)
        est = (2 * 2 * (H * tk * 2)                                   # 2x-buffered W1/W2 slabs
               + small_bytes
               + 2 * tm * H * in_bytes + 2 * tm * H * out_bytes
               + tm * H * 4                                           # fp32 accumulator
               + tm * tk * (4 + 2)                                    # intermediates
               + 4 * tm * H * 4)
        grid_spec = pltpu.PrefetchScalarGridSpec(
            num_scalar_prefetch=0,
            grid=(grid_rows, inner // tk),
            in_specs=[
                pl.BlockSpec((tm, H), lambda i, k: (i, 0)),           # x row tile
                pl.BlockSpec((H, tk), lambda i, k: (0, k)),           # W1 column slab
                pl.BlockSpec((1, tk), lambda i, k: (0, k)),           # b1 slab
                pl.BlockSpec((tk, H), lambda i, k: (k, 0)),           # W2 row slab
                vmem_full, vmem_full, vmem_full,                      # b2, gamma, beta
            ],
            out_specs=pl.BlockSpec((tm, H), lambda i, k: (i, 0)),
            scratch_shapes=[pltpu.VMEM((tm, H), jnp.float32)],
        )
        dim_sem = ("parallel", "arbitrary")

    out2 = pl.pallas_call(
        kernel,
        out_shape=jax.ShapeDtypeStruct((padded, H), input_tensor.dtype),
        grid_spec=grid_spec,
        compiler_params=pltpu.CompilerParams(
            dimension_semantics=dim_sem,
            vmem_limit_bytes=_vmem_limit_bytes(est)),
        cost_estimate=cost,
    )(x2, prepared["w1"], prepared["b1"], prepared["w2"], prepared["b2"],
      prepared["gamma"], prepared["beta"])

    if padded != rows:
        out2 = out2[:rows]
    return out2.reshape(B, S, H)


# ---------------------------------------------------------------------------
# Reference + test
# ---------------------------------------------------------------------------
def _reference(x, params, *, hidden_act, layer_norm_eps):
    """Pure-JAX fp32 reference mirroring the PyTorch forward (dropout = identity)."""
    xf = x.astype(jnp.float32)
    h = xf @ params["w1"].T + params["b1"]
    if hidden_act == "gelu":
        h = h * 0.5 * (1.0 + jax.lax.erf(h / math.sqrt(2.0)))
    elif hidden_act == "relu":
        h = jnp.maximum(h, 0.0)
    elif hidden_act == "swish":
        h = h * jax.nn.sigmoid(h)
    elif hidden_act == "tanh":
        h = jnp.tanh(h)
    elif hidden_act == "sigmoid":
        h = jax.nn.sigmoid(h)
    y = h @ params["w2"].T + params["b2"]
    hidden = y + xf
    mu = jnp.mean(hidden, axis=-1, keepdims=True)
    var = jnp.mean(jnp.square(hidden - mu), axis=-1, keepdims=True)
    return ((hidden - mu) / jnp.sqrt(var + layer_norm_eps)
            * params["gamma"] + params["beta"])


def _make_params(key, H, inner):
    keys = jax.random.split(key, 4)

    def init_linear(kw, kb, fan_in, fan_out):
        bound = 1.0 / math.sqrt(fan_in)
        w = jax.random.uniform(kw, (fan_out, fan_in), jnp.float32, -bound, bound)
        b = jax.random.uniform(kb, (fan_out,), jnp.float32, -bound, bound)
        return w, b

    w1, b1 = init_linear(keys[0], keys[1], H, inner)
    w2, b2 = init_linear(keys[2], keys[3], inner, H)
    return dict(w1=w1, b1=b1, w2=w2, b2=b2,
                gamma=jnp.ones((H,), jnp.float32),
                beta=jnp.zeros((H,), jnp.float32))


if __name__ == "__main__":
    layer_norm_eps = 1e-12
    key = jax.random.PRNGKey(0)
    k_params, k_params2, k_x1, k_x2 = jax.random.split(key, 4)

    # --- Test 1: resident-weight path, tanh-approx gelu (default fast path) ---
    B, S, H, inner = 2, 8, 32, 128
    params = _make_params(k_params, H, inner)
    prepared = prepare_params(params)                   # one-time weight prep
    x = jax.random.normal(k_x1, (B, S, H), jnp.float32)

    out = feed_forward(x, prepared, hidden_act="gelu",
                       layer_norm_eps=layer_norm_eps)
    out = jax.block_until_ready(out)
    ref = _reference(x, params, hidden_act="gelu", layer_norm_eps=layer_norm_eps)
    assert out.shape == (B, S, H)
    # bf16 MXU operands (fp32 accumulation) + tanh-approx gelu -> bf16-level tol.
    assert jnp.allclose(out, ref, atol=2e-2, rtol=2e-2), "resident-path mismatch"

    # --- Test 2: weight-tiled fallback path (forced), exact-erf gelu,
    #             non-divisible row count to exercise row padding ---
    B2, S2, H2, inner2 = 2, 7, 32, 256
    params2 = _make_params(k_params2, H2, inner2)
    prepared2 = prepare_params(params2)
    x2 = jax.random.normal(k_x2, (B2, S2, H2), jnp.float32)

    out2 = feed_forward(x2, prepared2, hidden_act="gelu",
                        layer_norm_eps=layer_norm_eps,
                        exact_gelu=True, force_ktiled=True)
    out2 = jax.block_until_ready(out2)
    ref2 = _reference(x2, params2, hidden_act="gelu", layer_norm_eps=layer_norm_eps)
    assert out2.shape == (B2, S2, H2)
    assert jnp.allclose(out2, ref2, atol=2e-2, rtol=2e-2), "k-tiled-path mismatch"

    print("KERNEL_OK")
</pallas_src>

<mosaic_0001>
module attributes {stable_mosaic.version = 11 : i64} {
  func.func @_ffn_resident_kernel(%arg0: i32, %arg1: memref<8x32xf32, #tpu.memory_space<vmem>>, %arg2: memref<32x128xbf16, #tpu.memory_space<vmem>>, %arg3: memref<1x128xf32, #tpu.memory_space<vmem>>, %arg4: memref<128x32xbf16, #tpu.memory_space<vmem>>, %arg5: memref<1x32xf32, #tpu.memory_space<vmem>>, %arg6: memref<1x32xf32, #tpu.memory_space<vmem>>, %arg7: memref<1x32xf32, #tpu.memory_space<vmem>>, %arg8: memref<8x32xf32, #tpu.memory_space<vmem>>) attributes {dimension_semantics = [#tpu.dimension_semantics<parallel>], iteration_bounds = array<i64: 2>, scalar_prefetch = 0 : i64, scratch_operands = 0 : i64, tpu.core_type = #tpu.core_type<tc>, window_params = [{transform_indices = @transform_0, window_bounds = array<i64: 8, 32>}, {pipeline_mode = #tpu.pipeline_mode<synchronous>, transform_indices = @transform_1, window_bounds = array<i64: 32, 128>}, {pipeline_mode = #tpu.pipeline_mode<synchronous>, transform_indices = @transform_2, window_bounds = array<i64: 1, 128>}, {pipeline_mode = #tpu.pipeline_mode<synchronous>, transform_indices = @transform_3, window_bounds = array<i64: 128, 32>}, {pipeline_mode = #tpu.pipeline_mode<synchronous>, transform_indices = @transform_4, window_bounds = array<i64: 1, 32>}, {pipeline_mode = #tpu.pipeline_mode<synchronous>, transform_indices = @transform_5, window_bounds = array<i64: 1, 32>}, {pipeline_mode = #tpu.pipeline_mode<synchronous>, transform_indices = @transform_6, window_bounds = array<i64: 1, 32>}, {transform_indices = @transform_7, window_bounds = array<i64: 8, 32>}]} {
    %c0 = arith.constant 0 : index
    %c0_0 = arith.constant 0 : index
    %0 = vector.load %arg1[%c0, %c0_0] : memref<8x32xf32, #tpu.memory_space<vmem>>, vector<8x32xf32>
    %1 = arith.truncf %0 : vector<8x32xf32> to vector<8x32xbf16>
    %c0_1 = arith.constant 0 : index
    %c0_2 = arith.constant 0 : index
    %2 = vector.load %arg2[%c0_1, %c0_2] : memref<32x128xbf16, #tpu.memory_space<vmem>>, vector<32x128xbf16>
    %cst = arith.constant dense<0.000000e+00> : vector<8x128xf32>
    %3 = tpu.matmul %1, %2, %cst {dimension_numbers = #tpu.dot_dimension_numbers<[1], [0], [0], [1], [0, 0, 1, 1], [], []>} : vector<8x32xbf16>, vector<32x128xbf16>, vector<8x128xf32> -> vector<8x128xf32>
    %c0_3 = arith.constant 0 : index
    %c0_4 = arith.constant 0 : index
    %4 = vector.load %arg3[%c0_3, %c0_4] : memref<1x128xf32, #tpu.memory_space<vmem>>, vector<1x128xf32>
    %5 = vector.broadcast %4 : vector<1x128xf32> to vector<8x128xf32>
    %6 = arith.addf %3, %5 : vector<8x128xf32>
    %cst_5 = arith.constant 5.000000e-01 : f32
    %7 = vector.broadcast %cst_5 : f32 to vector<8x128xf32>
    %8 = arith.mulf %7, %6 : vector<8x128xf32>
    %cst_6 = arith.constant 4.471500e-02 : f32
    %9 = vector.broadcast %cst_6 : f32 to vector<8x128xf32>
    %10 = arith.mulf %9, %6 : vector<8x128xf32>
    %11 = arith.mulf %10, %6 : vector<8x128xf32>
    %12 = arith.mulf %11, %6 : vector<8x128xf32>
    %13 = arith.addf %6, %12 : vector<8x128xf32>
    %cst_7 = arith.constant 0.797884583 : f32
    %14 = vector.broadcast %cst_7 : f32 to vector<8x128xf32>
    %15 = arith.mulf %14, %13 : vector<8x128xf32>
    %16 = math.tanh %15 : vector<8x128xf32>
    %cst_8 = arith.constant 1.000000e+00 : f32
    %17 = vector.broadcast %cst_8 : f32 to vector<8x128xf32>
    %18 = arith.addf %17, %16 : vector<8x128xf32>
    %19 = arith.mulf %8, %18 : vector<8x128xf32>
    %20 = arith.truncf %19 : vector<8x128xf32> to vector<8x128xbf16>
    %c0_9 = arith.constant 0 : index
    %c0_10 = arith.constant 0 : index
    %21 = vector.load %arg4[%c0_9, %c0_10] : memref<128x32xbf16, #tpu.memory_space<vmem>>, vector<128x32xbf16>
    %cst_11 = arith.constant dense<0.000000e+00> : vector<8x32xf32>
    %22 = tpu.matmul %20, %21, %cst_11 {dimension_numbers = #tpu.dot_dimension_numbers<[1], [0], [0], [1], [0, 0, 1, 1], [], []>} : vector<8x128xbf16>, vector<128x32xbf16>, vector<8x32xf32> -> vector<8x32xf32>
    %c0_12 = arith.constant 0 : index
    %c0_13 = arith.constant 0 : index
    %23 = vector.load %arg5[%c0_12, %c0_13] : memref<1x32xf32, #tpu.memory_space<vmem>>, vector<1x32xf32>
    %24 = vector.broadcast %23 : vector<1x32xf32> to vector<8x32xf32>
    %25 = arith.addf %22, %24 : vector<8x32xf32>
    %26 = arith.addf %25, %0 : vector<8x32xf32>
    %c0_14 = arith.constant 0 : index
    %c0_15 = arith.constant 0 : index
    %27 = vector.load %arg6[%c0_14, %c0_15] : memref<1x32xf32, #tpu.memory_space<vmem>>, vector<1x32xf32>
    %c0_16 = arith.constant 0 : index
    %c0_17 = arith.constant 0 : index
    %28 = vector.load %arg7[%c0_16, %c0_17] : memref<1x32xf32, #tpu.memory_space<vmem>>, vector<1x32xf32>
    %cst_18 = arith.constant dense<0.000000e+00> : vector<8xf32>
    %29 = vector.multi_reduction <add>, %26, %cst_18 [1] : vector<8x32xf32> to vector<8xf32>
    %30 = vector.shape_cast %29 : vector<8xf32> to vector<8x1xf32>
    %cst_19 = arith.constant 3.200000e+01 : f32
    %31 = vector.broadcast %cst_19 : f32 to vector<8x1xf32>
    %32 = arith.divf %30, %31 : vector<8x1xf32>
    %33 = vector.broadcast %32 : vector<8x1xf32> to vector<8x32xf32>
    %34 = arith.subf %26, %33 : vector<8x32xf32>
    %35 = arith.mulf %34, %34 : vector<8x32xf32>
    %cst_20 = arith.constant dense<0.000000e+00> : vector<8xf32>
    %36 = vector.multi_reduction <add>, %35, %cst_20 [1] : vector<8x32xf32> to vector<8xf32>
    %37 = vector.shape_cast %36 : vector<8xf32> to vector<8x1xf32>
    %cst_21 = arith.constant 3.200000e+01 : f32
    %38 = vector.broadcast %cst_21 : f32 to vector<8x1xf32>
    %39 = arith.divf %37, %38 : vector<8x1xf32>
    %40 = vector.broadcast %32 : vector<8x1xf32> to vector<8x32xf32>
    %41 = arith.subf %26, %40 : vector<8x32xf32>
    %cst_22 = arith.constant 9.99999996E-13 : f32
    %42 = vector.broadcast %cst_22 : f32 to vector<8x1xf32>
    %43 = arith.addf %39, %42 : vector<8x1xf32>
    %44 = math.rsqrt %43 : vector<8x1xf32>
    %45 = vector.broadcast %44 : vector<8x1xf32> to vector<8x32xf32>
    %46 = arith.mulf %41, %45 : vector<8x32xf32>
    %47 = vector.broadcast %27 : vector<1x32xf32> to vector<8x32xf32>
    %48 = arith.mulf %46, %47 : vector<8x32xf32>
    %49 = vector.broadcast %28 : vector<1x32xf32> to vector<8x32xf32>
    %50 = arith.addf %48, %49 : vector<8x32xf32>
    %c0_23 = arith.constant 0 : index
    %c0_24 = arith.constant 0 : index
    %51 = vector.load %arg8[%c0_23, %c0_24] : memref<8x32xf32, #tpu.memory_space<vmem>>, vector<8x32xf32>
    tpu.vector_store %arg8[%c0_23, %c0_24], %50 {strides = array<i32>} : memref<8x32xf32, #tpu.memory_space<vmem>>, vector<8x32xf32>,
    return
  }
  func.func @transform_0(%arg0: i32) -> (i32, i32) {
    %c0_i32 = arith.constant 0 : i32
    %c0_i32_0 = arith.constant 0 : i32
    return %arg0, %c0_i32 : i32, i32
  }
  func.func @transform_1(%arg0: i32) -> (i32, i32) {
    %c0_i32 = arith.constant 0 : i32
    %c0_i32_0 = arith.constant 0 : i32
    %c0_i32_1 = arith.constant 0 : i32
    return %c0_i32, %c0_i32_0 : i32, i32
  }
  func.func @transform_2(%arg0: i32) -> (i32, i32) {
    %c0_i32 = arith.constant 0 : i32
    %c0_i32_0 = arith.constant 0 : i32
    %c0_i32_1 = arith.constant 0 : i32
    return %c0_i32, %c0_i32_0 : i32, i32
  }
  func.func @transform_3(%arg0: i32) -> (i32, i32) {
    %c0_i32 = arith.constant 0 : i32
    %c0_i32_0 = arith.constant 0 : i32
    %c0_i32_1 = arith.constant 0 : i32
    return %c0_i32, %c0_i32_0 : i32, i32
  }
  func.func @transform_4(%arg0: i32) -> (i32, i32) {
    %c0_i32 = arith.constant 0 : i32
    %c0_i32_0 = arith.constant 0 : i32
    %c0_i32_1 = arith.constant 0 : i32
    return %c0_i32, %c0_i32_0 : i32, i32
  }
  func.func @transform_5(%arg0: i32) -> (i32, i32) {
    %c0_i32 = arith.constant 0 : i32
    %c0_i32_0 = arith.constant 0 : i32
    %c0_i32_1 = arith.constant 0 : i32
    return %c0_i32, %c0_i32_0 : i32, i32
  }
  func.func @transform_6(%arg0: i32) -> (i32, i32) {
    %c0_i32 = arith.constant 0 : i32
    %c0_i32_0 = arith.constant 0 : i32
    %c0_i32_1 = arith.constant 0 : i32
    return %c0_i32, %c0_i32_0 : i32, i32
  }
  func.func @transform_7(%arg0: i32) -> (i32, i32) {
    %c0_i32 = arith.constant 0 : i32
    %c0_i32_0 = arith.constant 0 : i32
    return %arg0, %c0_i32 : i32, i32
  }
}

</mosaic_0001>

<llo_original>
// kernel: tpu_custom_call.1
$region0: #{tpu_custom_call.1}
  #allocation0 [shape = 'u32[]', space=smem, size = 0x4, offset = 0x4, fixed_abs, tag = 'smem constant byte address 0x4 - core index']
  #allocation1 [shape = 'u32[144,128]{1,0:T(1,128)}', space=vmem, size = 0x12000, scoped, tag = 'internal scratch']
  %s0 = inlined_call_operand.vmem [shape: f32[16,32], index: 0, kind: input, shape index: {}]
  %s1 = inlined_call_operand.vmem [shape: bf16[32,128], index: 1, kind: input, shape index: {}]
  %s2 = inlined_call_operand.vmem [shape: f32[1,128], index: 2, kind: input, shape index: {}]
  %s3 = inlined_call_operand.vmem [shape: bf16[128,32], index: 3, kind: input, shape index: {}]
  %s4 = inlined_call_operand.vmem [shape: f32[1,32], index: 4, kind: input, shape index: {}]
  %s5 = inlined_call_operand.vmem [shape: f32[1,32], index: 5, kind: input, shape index: {}]
  %s6 = inlined_call_operand.vmem [shape: f32[1,32], index: 6, kind: input, shape index: {}]
  %s7 = inlined_call_operand.hbm [shape: f32[16,32], index: 7, kind: output, shape index: {}]
  %s8 = sld [smem:[#allocation0]]
  $region61: #{tpu_custom_call.1} parent=0
    _
  %s10 = ssub.s32 1, %s8
  %s11 = scalar_select 0, %s10, %s8
  $region1: #{tpu_custom_call.1} parent=0
    #allocation2 [shape = 'u8[8192]{0}', space=vmem, size = 0x2000, scoped, tag = 'output window, operand 0']
    #allocation3 [shape = 's32[2]{0}', space=sflag, size = 0x8, scoped, tag = 'scoped memory for tpu_custom_call.1']
    %12 = vsyncpa [#allocation3], 0
    %s13 = scalar_lea.sflag [#allocation3], 1
    %14 = vsyncpa %s13, 0
    loop: start=0, step=1, limit=4
    $region2: #{tpu_custom_call.1} parent=1 // loop_pre_header
      _
    $region3: #{tpu_custom_call.1} parent=1 // loop_header
      %s16 = sphi 0, %s20
      %p17 = scmp.ge.s32.totalorder %s16, 4
      %s26 = sphi 0, %s28
      %s29 = sphi 0, %s26
      %s30 = sphi 0, %s29
      %s46 = sphi 0, %s30
      %s50 = sphi 0, %s50
      %s52 = sphi 0, %s50
      %s53 = sphi 0, %s52
      %s67 = sphi 0, %s53
      %s71 = sphi 0, %s71
      %s73 = sphi 0, %s71
      %s74 = sphi 0, %s73
      %s88 = sphi 0, %s74
      %s92 = sphi 0, %s92
      %s94 = sphi 0, %s92
      %s95 = sphi 0, %s94
      %s109 = sphi 0, %s95
      %s113 = sphi 0, %s113
      %s115 = sphi 0, %s113
      %s116 = sphi 0, %s115
      %s130 = sphi 0, %s116
      %s134 = sphi 0, %s134
      %s136 = sphi 0, %s134
      %s137 = sphi 0, %s136
      %s151 = sphi 0, %s137
      %s155 = sphi 0, %s155
      %s157 = sphi 0, %s155
      %s158 = sphi 0, %s157
      %s172 = sphi 0, %s158
      %s178 = sphi 0, %s180
      %s181 = sphi 0, %s178
      %s182 = sphi 0, %s181
      %s198 = sphi 0, %s182
    $region4: #{tpu_custom_call.1} parent=1 // loop_header_branch
      %19 = sbr.rel (%p17) target = $region8
    $region5: #{tpu_custom_call.1} parent=1 // loop_body
      %s21 = ssub.s32 %s16, 1
      %s22 = ssub.s32 %s16, 2
      %s23 = sadd.s32 %s16, 1
      %s24 = ssub.s32 %s16, %s23
      %p25 = scmp.eq.s32.totalorder %s24, 0
      %s27 = sadd.s32 %s26, 1
      %s28 = scalar_select %p25, %s26, %s27
      %p31 = pneg %p25
      %p32 = scmp.eq.s32.totalorder %s16, 1
      %p33 = por %p31, %p32
      %p34 = scmp.ne.s32.totalorder %s26, %s29
      %p35 = scmp.eq.s32.totalorder %s16, 0
      %p36 = por %p34, %p35
      %p37 = scmp.ne.s32.totalorder %s26, %s29
      %p38 = scmp.eq.s32.totalorder %s21, 1
      %p39 = por %p37, %p38
      %p40 = scmp.ne.s32.totalorder %s29, %s30
      %p41 = scmp.eq.s32.totalorder %s21, 0
      %p42 = por %p40, %p41
      %p43 = scmp.ne.s32.totalorder %s29, %s30
      %p44 = scmp.eq.s32.totalorder %s22, 1
      %p45 = por %p43, %p44
      %p47 = scmp.ne.s32.totalorder %s30, %s46
      %p48 = scmp.eq.s32.totalorder %s22, 0
      %p49 = por %p47, %p48
      %s51 = sadd.s32 %s50, 1
      %p54 = scmp.eq.s32.totalorder %s16, 1
      %p55 = scmp.ne.s32.totalorder %s50, %s52
      %p56 = scmp.eq.s32.totalorder %s16, 0
      %p57 = por %p55, %p56
      %p58 = scmp.ne.s32.totalorder %s50, %s52
      %p59 = scmp.eq.s32.totalorder %s21, 1
      %p60 = por %p58, %p59
      %p61 = scmp.ne.s32.totalorder %s52, %s53
      %p62 = scmp.eq.s32.totalorder %s21, 0
      %p63 = por %p61, %p62
      %p64 = scmp.ne.s32.totalorder %s52, %s53
      %p65 = scmp.eq.s32.totalorder %s22, 1
      %p66 = por %p64, %p65
      %p68 = scmp.ne.s32.totalorder %s53, %s67
      %p69 = scmp.eq.s32.totalorder %s22, 0
      %p70 = por %p68, %p69
      %s72 = sadd.s32 %s71, 1
      %p75 = scmp.eq.s32.totalorder %s16, 1
      %p76 = scmp.ne.s32.totalorder %s71, %s73
      %p77 = scmp.eq.s32.totalorder %s16, 0
      %p78 = por %p76, %p77
      %p79 = scmp.ne.s32.totalorder %s71, %s73
      %p80 = scmp.eq.s32.totalorder %s21, 1
      %p81 = por %p79, %p80
      %p82 = scmp.ne.s32.totalorder %s73, %s74
      %p83 = scmp.eq.s32.totalorder %s21, 0
      %p84 = por %p82, %p83
      %p85 = scmp.ne.s32.totalorder %s73, %s74
      %p86 = scmp.eq.s32.totalorder %s22, 1
      %p87 = por %p85, %p86
      %p89 = scmp.ne.s32.totalorder %s74, %s88
      %p90 = scmp.eq.s32.totalorder %s22, 0
      %p91 = por %p89, %p90
      %s93 = sadd.s32 %s92, 1
      %p96 = scmp.eq.s32.totalorder %s16, 1
      %p97 = scmp.ne.s32.totalorder %s92, %s94
      %p98 = scmp.eq.s32.totalorder %s16, 0
      %p99 = por %p97, %p98
      %p100 = scmp.ne.s32.totalorder %s92, %s94
      %p101 = scmp.eq.s32.totalorder %s21, 1
      %p102 = por %p100, %p101
      %p103 = scmp.ne.s32.totalorder %s94, %s95
      %p104 = scmp.eq.s32.totalorder %s21, 0
      %p105 = por %p103, %p104
      %p106 = scmp.ne.s32.totalorder %s94, %s95
      %p107 = scmp.eq.s32.totalorder %s22, 1
      %p108 = por %p106, %p107
      %p110 = scmp.ne.s32.totalorder %s95, %s109
      %p111 = scmp.eq.s32.totalorder %s22, 0
      %p112 = por %p110, %p111
      %s114 = sadd.s32 %s113, 1
      %p117 = scmp.eq.s32.totalorder %s16, 1
      %p118 = scmp.ne.s32.totalorder %s113, %s115
      %p119 = scmp.eq.s32.totalorder %s16, 0
      %p120 = por %p118, %p119
      %p121 = scmp.ne.s32.totalorder %s113, %s115
      %p122 = scmp.eq.s32.totalorder %s21, 1
      %p123 = por %p121, %p122
      %p124 = scmp.ne.s32.totalorder %s115, %s116
      %p125 = scmp.eq.s32.totalorder %s21, 0
      %p126 = por %p124, %p125
      %p127 = scmp.ne.s32.totalorder %s115, %s116
      %p128 = scmp.eq.s32.totalorder %s22, 1
      %p129 = por %p127, %p128
      %p131 = scmp.ne.s32.totalorder %s116, %s130
      %p132 = scmp.eq.s32.totalorder %s22, 0
      %p133 = por %p131, %p132
      %s135 = sadd.s32 %s134, 1
      %p138 = scmp.eq.s32.totalorder %s16, 1
      %p139 = scmp.ne.s32.totalorder %s134, %s136
      %p140 = scmp.eq.s32.totalorder %s16, 0
      %p141 = por %p139, %p140
      %p142 = scmp.ne.s32.totalorder %s134, %s136
      %p143 = scmp.eq.s32.totalorder %s21, 1
      %p144 = por %p142, %p143
      %p145 = scmp.ne.s32.totalorder %s136, %s137
      %p146 = scmp.eq.s32.totalorder %s21, 0
      %p147 = por %p145, %p146
      %p148 = scmp.ne.s32.totalorder %s136, %s137
      %p149 = scmp.eq.s32.totalorder %s22, 1
      %p150 = por %p148, %p149
      %p152 = scmp.ne.s32.totalorder %s137, %s151
      %p153 = scmp.eq.s32.totalorder %s22, 0
      %p154 = por %p152, %p153
      %s156 = sadd.s32 %s155, 1
      %p159 = scmp.eq.s32.totalorder %s16, 1
      %p160 = scmp.ne.s32.totalorder %s155, %s157
      %p161 = scmp.eq.s32.totalorder %s16, 0
      %p162 = por %p160, %p161
      %p163 = scmp.ne.s32.totalorder %s155, %s157
      %p164 = scmp.eq.s32.totalorder %s21, 1
      %p165 = por %p163, %p164
      %p166 = scmp.ne.s32.totalorder %s157, %s158
      %p167 = scmp.eq.s32.totalorder %s21, 0
      %p168 = por %p166, %p167
      %p169 = scmp.ne.s32.totalorder %s157, %s158
      %p170 = scmp.eq.s32.totalorder %s22, 1
      %p171 = por %p169, %p170
      %p173 = scmp.ne.s32.totalorder %s158, %s172
      %p174 = scmp.eq.s32.totalorder %s22, 0
      %p175 = por %p173, %p174
      %s176 = ssub.s32 %s16, %s23
      %p177 = scmp.eq.s32.totalorder %s176, 0
      %s179 = sadd.s32 %s178, 1
      %s180 = scalar_select %p177, %s178, %s179
      %p183 = pneg %p177
      %p184 = scmp.eq.s32.totalorder %s16, 1
      %p185 = por %p183, %p184
      %p186 = scmp.ne.s32.totalorder %s178, %s181
      %p187 = scmp.eq.s32.totalorder %s16, 0
      %p188 = por %p186, %p187
      %p189 = scmp.ne.s32.totalorder %s178, %s181
      %p190 = scmp.eq.s32.totalorder %s21, 1
      %p191 = por %p189, %p190
      %p192 = scmp.ne.s32.totalorder %s181, %s182
      %p193 = scmp.eq.s32.totalorder %s21, 0
      %p194 = por %p192, %p193
      %p195 = scmp.ne.s32.totalorder %s181, %s182
      %p196 = scmp.eq.s32.totalorder %s22, 1
      %p197 = por %p195, %p196
      %p199 = scmp.ne.s32.totalorder %s182, %s198
      %p200 = scmp.eq.s32.totalorder %s22, 0
      %p201 = por %p199, %p200
      %p202 = scmp.le.s32.totalorder 1, %s16
      %p203 = scmp.lt.s32.totalorder %s16, 3
      %p204 = pnand %p202, %p203
      %p205 = pneg %p204
      // Predicated region
      $region9: #{tpu_custom_call.1} parent=5 // pred_check
        _
      $region10: #{tpu_custom_call.1} parent=5 // pred_check_branch
        %207 = sbr.rel (%p204) target = $region12
      $region11: #{tpu_custom_call.1} parent=5 // pred_region
        %s208 = ssub.s32 %s16, 1
        // Predicated region
        $region13: #{tpu_custom_call.1} parent=11 // pred_check
          %p209 = pneg %p63
        $region14: #{tpu_custom_call.1} parent=11 // pred_check_branch
          %211 = sbr.rel (%p209) target = $region16
        $region15: #{tpu_custom_call.1} parent=11 // pred_region
          _
        $region16: #{tpu_custom_call.1} parent=11 // pred_fallthru
          _
        // Predicated region
        $region17: #{tpu_custom_call.1} parent=11 // pred_check
          %p212 = pneg %p84
        $region18: #{tpu_custom_call.1} parent=11 // pred_check_branch
          %214 = sbr.rel (%p212) target = $region20
        $region19: #{tpu_custom_call.1} parent=11 // pred_region
          _
        $region20: #{tpu_custom_call.1} parent=11 // pred_fallthru
          _
        // Predicated region
        $region21: #{tpu_custom_call.1} parent=11 // pred_check
          %p215 = pneg %p105
        $region22: #{tpu_custom_call.1} parent=11 // pred_check_branch
          %217 = sbr.rel (%p215) target = $region24
        $region23: #{tpu_custom_call.1} parent=11 // pred_region
          _
        $region24: #{tpu_custom_call.1} parent=11 // pred_fallthru
          _
        // Predicated region
        $region25: #{tpu_custom_call.1} parent=11 // pred_check
          %p218 = pneg %p126
        $region26: #{tpu_custom_call.1} parent=11 // pred_check_branch
          %220 = sbr.rel (%p218) target = $region28
        $region27: #{tpu_custom_call.1} parent=11 // pred_region
          _
        $region28: #{tpu_custom_call.1} parent=11 // pred_fallthru
          _
        // Predicated region
        $region29: #{tpu_custom_call.1} parent=11 // pred_check
          %p221 = pneg %p147
        $region30: #{tpu_custom_call.1} parent=11 // pred_check_branch
          %223 = sbr.rel (%p221) target = $region32
        $region31: #{tpu_custom_call.1} parent=11 // pred_region
          _
        $region32: #{tpu_custom_call.1} parent=11 // pred_fallthru
          _
        // Predicated region
        $region33: #{tpu_custom_call.1} parent=11 // pred_check
          %p224 = pneg %p168
        $region34: #{tpu_custom_call.1} parent=11 // pred_check_branch
          %226 = sbr.rel (%p224) target = $region36
        $region35: #{tpu_custom_call.1} parent=11 // pred_region
          _
        $region36: #{tpu_custom_call.1} parent=11 // pred_fallthru
          _
      $region12: #{tpu_custom_call.1} parent=5 // pred_fallthru
        _
      %p227 = scmp.lt.s32.totalorder %s16, 2
      // Predicated region
      $region37: #{tpu_custom_call.1} parent=5 // pred_check
        %p228 = pneg %p227
      $region38: #{tpu_custom_call.1} parent=5 // pred_check_branch
        %230 = sbr.rel (%p228) target = $region40
      $region39: #{tpu_custom_call.1} parent=5 // pred_region
        // Predicated region
        $region41: #{tpu_custom_call.1} parent=39 // pred_check
          %p231 = pneg %p36
        $region42: #{tpu_custom_call.1} parent=39 // pred_check_branch
          %233 = sbr.rel (%p231) target = $region44
        $region43: #{tpu_custom_call.1} parent=39 // pred_region
          %p234 = scmp.lt.s32.totalorder %s16, 1
          %s235 = scalar_select %p234, %s16, 1
          %s236 = smul.addr %s235, 8
          %s237 = scalar_lea.vmem %s0, %s236
        $region44: #{tpu_custom_call.1} parent=39 // pred_fallthru
          _
      $region40: #{tpu_custom_call.1} parent=5 // pred_fallthru
        _
      %p238 = scmp.le.s32.totalorder 1, %s16
      %p239 = scmp.lt.s32.totalorder %s16, 3
      %p240 = pnand %p238, %p239
      %p241 = pneg %p240
      // Predicated region
      $region45: #{tpu_custom_call.1} parent=5 // pred_check
        _
      $region46: #{tpu_custom_call.1} parent=5 // pred_check_branch
        %243 = sbr.rel (%p240) target = $region48
      $region47: #{tpu_custom_call.1} parent=5 // pred_region
        %s244 = ssub.s32 %s16, 1
        %p245 = scmp.lt.s32.totalorder %s21, 1
        %s246 = scalar_select %p245, %s21, 1
        %s247 = smul.addr %s246, 8
        %s248 = scalar_lea.vmem %s0, %s247
        %p249 = pneg %p42
        %p250 = pneg %p39
        %p251 = pneg %p63
        %p252 = pneg %p60
        %p253 = pneg %p84
        %p254 = pneg %p81
        %p255 = pneg %p105
        %p256 = pneg %p102
        %p257 = pneg %p126
        %p258 = pneg %p123
        %p259 = pneg %p147
        %p260 = pneg %p144
        %p261 = pneg %p168
        %p262 = pneg %p165
        %p263 = pneg %p194
        %p264 = pneg %p191
        %s265 = sand.u32 %s181, 1
        %s266 = scalar_lea.sflag [#allocation3], %s265
        %s267 = sand.u32 %s181, 1
        %s268 = smul.addr %s267, 8
        %s269 = scalar_lea.vmem [#allocation2], %s268
        %p270 = scmp.lt.s32.totalorder %s21, 1
        %s271 = scalar_select %p270, %s21, 1
        %s272 = smul.addr %s271, 8
        %s273 = scalar_lea.vmem %s0, %s272
        %v275 = vld [vmem:[%s273] sm:$0xff]
        %v276 = vpack.c.bf16 %v275, %v275
        %v277 = vld [vmem:[%s1] sm:$0xf]
        %v278 = vld [vmem:[%s1 + $0x4] sm:$0xf]
        %v279 = vld [vmem:[%s1 + $0x8] sm:$0xf]
        %v280 = vld [vmem:[%s1 + $0xc] sm:$0xf]
        %v281 = vld [vmem:[%s2] sm:$0x1]
        %v283 = vlaneseq
        %v284 = vshrl.u32 %v283, 7
        %v285 = vsub.s32 0, %v284
        %v286 = vrot.slane %v281, %v285
        %v292 = vunpack.c.l.b16 %v277
        %v293 = vunpack.c.l.b16 %v278
        %v294 = vunpack.c.l.b16 %v279
        %v295 = vunpack.c.l.b16 %v280
        %v296 = vpack.c.b16 %v293, %v292
        %v297 = vpack.c.b16 %v295, %v294
        %vm300 = vcmask 261120
        %v302 = vsel %vm300, %v276, 0
        %304 = vmatprep.subr.bf16.mxu0 0
        %305 = vmatpush1.bf16.msra.mxu0 0
        %306 = vmatprep.subr.bf16.mxu0 0
        %307 = vmatpush1.bf16.msra.mxu0 0
        %308 = vmatprep.subr.bf16.mxu0 0
        %309 = vmatpush1.bf16.msra.mxu0 0
        %310 = vmatprep.subr.bf16.mxu0 0
        %311 = vmatpush1.bf16.msra.mxu0 0
        %312 = vmatprep.subr.bf16.mxu0 0
        %313 = vmatpush1.bf16.msra.mxu0 0
        %314 = vmatprep.subr.bf16.mxu0 0
        %315 = vmatpush1.bf16.msra.mxu0 0
        %316 = vmatprep.subr.bf16.mxu0 0
        %317 = vmatpush1.bf16.msra.mxu0 %v297
        %318 = vmatprep.subr.bf16.mxu0 0
        %319 = vmatpush1.bf16.msra.mxu0 %v296
        %320 = vmatprep.subr.bf16.mxu0 0
        %321 = vmatpush2.bf16.msra.mxu0 0
        %322 = vmatprep.subr.bf16.mxu0 0
        %323 = vmatpush2.bf16.msra.mxu0 0
        %324 = vmatprep.subr.bf16.mxu0 0
        %325 = vmatpush2.bf16.msra.mxu0 0
        %326 = vmatprep.subr.bf16.mxu0 0
        %327 = vmatpush2.bf16.msra.mxu0 0
        %328 = vmatprep.subr.bf16.mxu0 0
        %329 = vmatpush2.bf16.msra.mxu0 0
        %330 = vmatprep.subr.bf16.mxu0 0
        %331 = vmatpush2.bf16.msra.mxu0 0
        %332 = vmatprep.subr.bf16.mxu0 0
        %333 = vmatpush2.bf16.msra.mxu0 0
        %334 = vmatprep.subr.bf16.mxu0 0
        %335 = vmatpush2.bf16.msra.mxu0 0
        %336 = vmatprep.mubr.bf16.mxu0 0
        %337 = vmatmul.mubr.bf16.gmra.mxu0 %v302
        %v338 = vpop.f32.mrf.mxu0
        %v339 = vadd.f32 %v286, %v338
        %v340 = vpop.f32.mrf.mxu0
        %v341 = vpop.f32.mrf.mxu0
        %v342 = vpop.f32.mrf.mxu0
        %343 = vdwg.mxu0
        %v344 = vmul.f32 %v339, 0.5
        %v345 = vmul.f32 %v339, 0.044715
        %v346 = vmul.f32 %v345, %v339
        %v347 = vmul.f32 %v346, %v339
        %v348 = vadd.f32 %v339, %v347
        %v349 = vmul.f32 %v348, 0.7978846
        %v350 = vtanh.pop %v349
        %v351 = vadd.f32 %v350, 1.0
        %v352 = vmul.f32 %v344, %v351
        %v353 = vpack.c.bf16 %v352, %v352
        %v354 = vld [vmem:[%s3] sm:$0xf]
        %v355 = vld [vmem:[%s3 + $0x4] sm:$0xf]
        %v356 = vld [vmem:[%s3 + $0x8] sm:$0xf]
        %v357 = vld [vmem:[%s3 + $0xc] sm:$0xf]
        %v358 = vld [vmem:[%s3 + $0x10] sm:$0xf]
        %v359 = vld [vmem:[%s3 + $0x14] sm:$0xf]
        %v360 = vld [vmem:[%s3 + $0x18] sm:$0xf]
        %v361 = vld [vmem:[%s3 + $0x1c] sm:$0xf]
        %v362 = vld [vmem:[%s3 + $0x20] sm:$0xf]
        %v363 = vld [vmem:[%s3 + $0x24] sm:$0xf]
        %v364 = vld [vmem:[%s3 + $0x28] sm:$0xf]
        %v365 = vld [vmem:[%s3 + $0x2c] sm:$0xf]
        %v366 = vld [vmem:[%s3 + $0x30] sm:$0xf]
        %v367 = vld [vmem:[%s3 + $0x34] sm:$0xf]
        %v368 = vld [vmem:[%s3 + $0x38] sm:$0xf]
        %v369 = vld [vmem:[%s3 + $0x3c] sm:$0xf]
        %v370 = vld [vmem:[%s4] sm:$0x1]
        %v372 = vlaneseq
        %v373 = vshrl.u32 %v372, 7
        %v374 = vsub.s32 0, %v373
        %v375 = vrot.slane %v370, %v374
        %v393 = vunpack.c.l.b16 %v354
        %v394 = vunpack.c.l.b16 %v355
        %v395 = vunpack.c.l.b16 %v356
        %v396 = vunpack.c.l.b16 %v357
        %v397 = vunpack.c.l.b16 %v358
        %v398 = vunpack.c.l.b16 %v359
        %v399 = vunpack.c.l.b16 %v360
        %v400 = vunpack.c.l.b16 %v361
        %v401 = vunpack.c.l.b16 %v362
        %v402 = vunpack.c.l.b16 %v363
        %v403 = vunpack.c.l.b16 %v364
        %v404 = vunpack.c.l.b16 %v365
        %v405 = vunpack.c.l.b16 %v366
        %v406 = vunpack.c.l.b16 %v367
        %v407 = vunpack.c.l.b16 %v368
        %v408 = vunpack.c.l.b16 %v369
        %v409 = vpack.c.b16 %v394, %v393
        %v410 = vpack.c.b16 %v396, %v395
        %v411 = vpack.c.b16 %v398, %v397
        %v412 = vpack.c.b16 %v400, %v399
        %v413 = vpack.c.b16 %v402, %v401
        %v414 = vpack.c.b16 %v404, %v403
        %v415 = vpack.c.b16 %v406, %v405
        %v416 = vpack.c.b16 %v408, %v407
        %425 = vmatprep.subr.bf16.mxu0 0
        %426 = vmatpush1.bf16.msra.mxu0 %v416
        %427 = vmatprep.subr.bf16.mxu0 0
        %428 = vmatpush1.bf16.msra.mxu0 %v415
        %429 = vmatprep.subr.bf16.mxu0 0
        %430 = vmatpush1.bf16.msra.mxu0 %v414
        %431 = vmatprep.subr.bf16.mxu0 0
        %432 = vmatpush1.bf16.msra.mxu0 %v413
        %433 = vmatprep.subr.bf16.mxu0 0
        %434 = vmatpush1.bf16.msra.mxu0 %v412
        %435 = vmatprep.subr.bf16.mxu0 0
        %436 = vmatpush1.bf16.msra.mxu0 %v411
        %437 = vmatprep.subr.bf16.mxu0 0
        %438 = vmatpush1.bf16.msra.mxu0 %v410
        %439 = vmatprep.subr.bf16.mxu0 0
        %440 = vmatpush1.bf16.msra.mxu0 %v409
        %441 = vmatprep.subr.bf16.mxu0 0
        %442 = vmatpush2.bf16.msra.mxu0 0
        %443 = vmatprep.subr.bf16.mxu0 0
        %444 = vmatpush2.bf16.msra.mxu0 0
        %445 = vmatprep.subr.bf16.mxu0 0
        %446 = vmatpush2.bf16.msra.mxu0 0
        %447 = vmatprep.subr.bf16.mxu0 0
        %448 = vmatpush2.bf16.msra.mxu0 0
        %449 = vmatprep.subr.bf16.mxu0 0
        %450 = vmatpush2.bf16.msra.mxu0 0
        %451 = vmatprep.subr.bf16.mxu0 0
        %452 = vmatpush2.bf16.msra.mxu0 0
        %453 = vmatprep.subr.bf16.mxu0 0
        %454 = vmatpush2.bf16.msra.mxu0 0
        %455 = vmatprep.subr.bf16.mxu0 0
        %456 = vmatpush2.bf16.msra.mxu0 0
        %457 = vmatprep.mubr.bf16.mxu0 0
        %458 = vmatmul.mubr.bf16.gmra.mxu0 %v353
        %v459 = vpop.f32.mrf.mxu0
        %v460 = vadd.f32 %v375, %v459
        %v461 = vpop.f32.mrf.mxu0
        %v462 = vpop.f32.mrf.mxu0
        %v463 = vpop.f32.mrf.mxu0
        %464 = vdwg.mxu0
        %v465 = vadd.f32 %v460, %v275
        %v466 = vld [vmem:[%s5] sm:$0x1]
        %v467 = vld [vmem:[%s6] sm:$0x1]
        %v468 = vsel %vm300, %v465, 0.0
        %469 = vadd.xlane.f32.xlu0 %v468
        %v470 = vpop.xlane.xlu0 %469
        %v471 = vrcp.pop 32.0
        %v472 = vmul.f32 %v470, %v471
        %v473 = vsub.f32 %v465, %v472
        %v474 = vmul.f32 %v473, %v473
        %v475 = vsel %vm300, %v474, 0.0
        %476 = vadd.xlane.f32.xlu0 %v475
        %v477 = vpop.xlane.xlu0 %476
        %v478 = vmul.f32 %v477, %v471
        %v479 = vadd.f32 %v478, 1e-12
        %v480 = vrsqrt.pop %v479
        %v481 = vmul.f32 %v473, %v480
        %v483 = vlaneseq
        %v484 = vshrl.u32 %v483, 7
        %v485 = vsub.s32 0, %v484
        %v486 = vrot.slane %v466, %v485
        %v488 = vmul.f32 %v481, %v486
        %v490 = vlaneseq
        %v491 = vshrl.u32 %v490, 7
        %v492 = vsub.s32 0, %v491
        %v493 = vrot.slane %v467, %v492
        %v495 = vadd.f32 %v488, %v493
        %496 = vst.msk [vmem:[%s269] sm:$0xff] %vm300, %v495
        %s497 = sand.u32 %s181, 1
        %s498 = scalar_lea.sflag [#allocation3], %s497
        %s499 = sand.u32 %s181, 1
        %s500 = smul.addr %s499, 8
        %s501 = scalar_lea.vmem [#allocation2], %s500
        // Predicated region
        $region49: #{tpu_custom_call.1} parent=47 // pred_check
          %p502 = pneg %p191
        $region50: #{tpu_custom_call.1} parent=47 // pred_check_branch
          %504 = sbr.rel (%p502) target = $region52
        $region51: #{tpu_custom_call.1} parent=47 // pred_region
          %s506 = ssub.s32 128, 128
          %507 = vsyncadd %s498, %s506
          %s508 = smul.addr %s21, 128
          %s509 = scalar_lea.hbm %s7, %s508
          %s511 = sshll.u32 %s501, 4
          %s512 = int_to_ptr.vmem [resolvable:$true] %s511
          %514 = dma.vmem_to_hbm [thread:$0]  %s512, 128, %s509, %s498
        $region52: #{tpu_custom_call.1} parent=47 // pred_fallthru
          _
      $region48: #{tpu_custom_call.1} parent=5 // pred_fallthru
        _
      %p515 = scmp.le.s32.totalorder 2, %s16
      // Predicated region
      $region53: #{tpu_custom_call.1} parent=5 // pred_check
        %p516 = pneg %p515
      $region54: #{tpu_custom_call.1} parent=5 // pred_check_branch
        %518 = sbr.rel (%p516) target = $region56
      $region55: #{tpu_custom_call.1} parent=5 // pred_region
        %s519 = ssub.s32 %s16, 2
        // Predicated region
        $region57: #{tpu_custom_call.1} parent=55 // pred_check
          %p520 = pneg %p197
        $region58: #{tpu_custom_call.1} parent=55 // pred_check_branch
          %522 = sbr.rel (%p520) target = $region60
        $region59: #{tpu_custom_call.1} parent=55 // pred_region
          %s523 = sand.u32 %s182, 1
          %s524 = scalar_lea.sflag [#allocation3], %s523
          %s525 = sand.u32 %s182, 1
          %s526 = smul.addr %s525, 8
          %s527 = scalar_lea.vmem [#allocation2], %s526
          %528 = dma.done %s524, 128
        $region60: #{tpu_custom_call.1} parent=55 // pred_fallthru
          _
      $region56: #{tpu_custom_call.1} parent=5 // pred_fallthru
        _
    $region6: #{tpu_custom_call.1} parent=1 // loop_footer
      %s20 = sadd.s32 1, %s16
    $region7: #{tpu_custom_call.1} parent=1 // loop_footer_branch
      %15 = sbr.rel target = $region3
    $region8: #{tpu_custom_call.1} parent=1 // loop_exit
      _
    %529 = vsyncpa [#allocation3], 1
    %s530 = scalar_lea.sflag [#allocation3], 1
    %531 = vsyncpa %s530, 1

</llo_original>
